<compile_context>
chip_gen: v7x
topology: tpu7x:2x2x1
jax: 0.10.0
libtpu: 0.0.40
codegen_flags: <defaults>
</compile_context>

<pallas_src>
import jax
import jax.numpy as jnp
from jax.experimental import pallas as pl
from jax.experimental.pallas import tpu as pltpu


def _nll_partial_kernel(out_ref, y_ref, partial_ref):
    """One batch tile -> lane-dense (1, 1, dim) per-feature partial sums."""
    dim = y_ref.shape[-1]
    mu = out_ref[:, :dim].astype(jnp.float32)                    # split on the VMEM ref
    var = jnp.maximum(out_ref[:, dim:].astype(jnp.float32), 1e-6)
    y = y_ref[...].astype(jnp.float32)
    diff = y - mu
    inv_var = pl.reciprocal(var, approx=False)                   # EUP, exact
    nll = 0.5 * (diff * diff * inv_var + jnp.log(var))           # (TILE_N, dim)
    # Sum over the tile's rows (sum over batch & features commutes for mean/sum).
    partial_ref[...] = jnp.sum(nll, axis=0)[None, None, :]       # (1, 1, dim)


def _nll_rows_kernel(out_ref, y_ref, res_ref):
    """One batch tile -> lane-dense (1, 1, TILE_N) per-sample NLL row."""
    dim = y_ref.shape[-1]
    mu = out_ref[:, :dim].astype(jnp.float32)
    var = jnp.maximum(out_ref[:, dim:].astype(jnp.float32), 1e-6)
    y = y_ref[...].astype(jnp.float32)
    diff = y - mu
    inv_var = pl.reciprocal(var, approx=False)
    nll = 0.5 * (diff * diff * inv_var + jnp.log(var))           # (TILE_N, dim)
    per_sample = jnp.sum(nll, axis=-1)                           # (TILE_N,)
    res_ref[...] = per_sample[None, None, :]                     # (1, 1, TILE_N)


def _choose_tile_n(n, dim, itemsize):
    """Batch-tile rows: ~6 MiB of input blocks per grid step (x2 for double
    buffering ~12 MiB), safe under v5e/v6e/v7x scoped-VMEM limits."""
    target_block_bytes = 6 * 1024 * 1024
    bytes_per_row = 3 * dim * itemsize          # one output row (2*dim) + one y row (dim)
    tile = target_block_bytes // max(bytes_per_row, 1)
    tile = max(8, min(int(tile), 1024))
    if tile >= 128:
        tile = (tile // 128) * 128              # lane-dense 'none' output rows
    else:
        tile = (tile // 8) * 8                  # sublane requirement
    n_ceil8 = ((n + 7) // 8) * 8
    if n_ceil8 <= tile:                         # small batch: single tile
        tile = n_ceil8
    return tile


def multivariate_gaussian_nll_loss(output, y, reduction="mean"):
    """JAX/Pallas equivalent of MultivariateGaussianNLLLossCustom.forward."""
    n, two_dim = output.shape
    dim = two_dim // 2
    assert y.shape == (n, dim), f"y shape {y.shape} incompatible with output {output.shape}"

    itemsize = jnp.dtype(output.dtype).itemsize
    tile_n = _choose_tile_n(n, dim, itemsize)
    num_tiles = -(-n // tile_n)                 # cdiv
    n_pad = num_tiles * tile_n
    if n_pad != n:
        # Pad rows with 1.0: mu=1, var=1, y=1 -> (1-1)^2/1 + log(1) = 0 contribution.
        output = jnp.pad(output, ((0, n_pad - n), (0, 0)), constant_values=1.0)
        y = jnp.pad(y, ((0, n_pad - n), (0, 0)), constant_values=1.0)

    in_specs = [
        pl.BlockSpec((tile_n, 2 * dim), lambda i: (i, 0)),
        pl.BlockSpec((tile_n, dim), lambda i: (i, 0)),
    ]
    compiler_params = pltpu.CompilerParams(
        dimension_semantics=("parallel",),          # shard tiles across v7x's 2 TCs
        vmem_limit_bytes=32 * 1024 * 1024,
    )
    in_bytes = 3 * n_pad * dim * itemsize

    if reduction in ("mean", "sum"):
        partials = pl.pallas_call(
            _nll_partial_kernel,
            out_shape=jax.ShapeDtypeStruct((num_tiles, 1, dim), jnp.float32),
            grid=(num_tiles,),
            in_specs=in_specs,
            out_specs=pl.BlockSpec((1, 1, dim), lambda i: (i, 0, 0)),
            compiler_params=compiler_params,
            cost_estimate=pl.CostEstimate(
                flops=6 * n_pad * dim,
                transcendentals=2 * n_pad * dim,
                bytes_accessed=in_bytes + num_tiles * dim * 4,
            ),
        )(output, y)
        total = jnp.sum(partials)                   # tiny finish-up reduction in JAX
        if reduction == "mean":
            return total / jnp.float32(n)           # true N, not padded N
        return total
    else:  # 'none' / no reduction: per-sample NLL of shape (N,)
        res = pl.pallas_call(
            _nll_rows_kernel,
            out_shape=jax.ShapeDtypeStruct((num_tiles, 1, tile_n), jnp.float32),
            grid=(num_tiles,),
            in_specs=in_specs,
            out_specs=pl.BlockSpec((1, 1, tile_n), lambda i: (i, 0, 0)),
            compiler_params=compiler_params,
            cost_estimate=pl.CostEstimate(
                flops=6 * n_pad * dim,
                transcendentals=2 * n_pad * dim,
                bytes_accessed=in_bytes + n_pad * 4,
            ),
        )(output, y)
        return res.reshape(-1)[:n]


def _reference(output, y, reduction="mean"):
    dim = output.shape[-1] // 2
    mu, var = output[:, :dim], output[:, dim:]
    var = jnp.maximum(var, 1e-6)
    nll = 0.5 * ((y - mu) ** 2 / var + jnp.log(var))
    nll = jnp.sum(nll, axis=-1)
    if reduction == "mean":
        return jnp.mean(nll)
    elif reduction == "sum":
        return jnp.sum(nll)
    return nll


if __name__ == "__main__":
    key = jax.random.PRNGKey(0)
    k_out, k_y, k_out2, k_y2 = jax.random.split(key, 4)

    N, DIM = 8, 32                      # output: [N, 2*DIM], y: [N, DIM]
    output = jax.random.normal(k_out, (N, 2 * DIM), dtype=jnp.float32)
    y = jax.random.normal(k_y, (N, DIM), dtype=jnp.float32)

    # mean
    loss = multivariate_gaussian_nll_loss(output, y, reduction="mean")
    jax.block_until_ready(loss)
    assert jnp.allclose(loss, _reference(output, y, "mean"), rtol=1e-5, atol=1e-5)

    # sum
    loss_sum = multivariate_gaussian_nll_loss(output, y, reduction="sum")
    jax.block_until_ready(loss_sum)
    assert jnp.allclose(loss_sum, _reference(output, y, "sum"), rtol=1e-5, atol=1e-5)

    # none (per-sample)
    loss_none = multivariate_gaussian_nll_loss(output, y, reduction="none")
    jax.block_until_ready(loss_none)
    assert jnp.allclose(loss_none, _reference(output, y, "none"), rtol=1e-5, atol=1e-5)

    # exercise the remainder / padding path (N not a multiple of the tile)
    N2 = 10
    output2 = jax.random.normal(k_out2, (N2, 2 * DIM), dtype=jnp.float32)
    y2 = jax.random.normal(k_y2, (N2, DIM), dtype=jnp.float32)
    loss2 = multivariate_gaussian_nll_loss(output2, y2, reduction="mean")
    jax.block_until_ready(loss2)
    assert jnp.allclose(loss2, _reference(output2, y2, "mean"), rtol=1e-5, atol=1e-5)
    loss2_none = multivariate_gaussian_nll_loss(output2, y2, reduction="none")
    jax.block_until_ready(loss2_none)
    assert jnp.allclose(loss2_none, _reference(output2, y2, "none"), rtol=1e-5, atol=1e-5)

    print("KERNEL_OK")
</pallas_src>

<mosaic_0001>
module attributes {stable_mosaic.version = 11 : i64} {
  func.func @_nll_partial_kernel(%arg0: i32, %arg1: memref<8x64xf32, #tpu.memory_space<vmem>>, %arg2: memref<8x32xf32, #tpu.memory_space<vmem>>, %arg3: memref<1x1x32xf32, #tpu.memory_space<vmem>>) attributes {dimension_semantics = [#tpu.dimension_semantics<parallel>], iteration_bounds = array<i64: 1>, scalar_prefetch = 0 : i64, scratch_operands = 0 : i64, tpu.core_type = #tpu.core_type<tc>, window_params = [{transform_indices = @transform_0, window_bounds = array<i64: 8, 64>}, {transform_indices = @transform_1, window_bounds = array<i64: 8, 32>}, {transform_indices = @transform_2, window_bounds = array<i64: 1, 1, 32>}]} {
    %c0 = arith.constant 0 : index
    %c0_0 = arith.constant 0 : index
    %0 = vector.load %arg1[%c0, %c0_0] : memref<8x64xf32, #tpu.memory_space<vmem>>, vector<8x32xf32>
    %c0_1 = arith.constant 0 : index
    %c32 = arith.constant 32 : index
    %1 = vector.load %arg1[%c0_1, %c32] : memref<8x64xf32, #tpu.memory_space<vmem>>, vector<8x32xf32>
    %cst = arith.constant 9.99999997E-7 : f32
    %2 = vector.broadcast %cst : f32 to vector<8x32xf32>
    %3 = arith.maximumf %1, %2 : vector<8x32xf32>
    %c0_2 = arith.constant 0 : index
    %c0_3 = arith.constant 0 : index
    %4 = vector.load %arg2[%c0_2, %c0_3] : memref<8x32xf32, #tpu.memory_space<vmem>>, vector<8x32xf32>
    %5 = arith.subf %4, %0 : vector<8x32xf32>
    %6 = tpu.reciprocal %3 : vector<8x32xf32> -> vector<8x32xf32>
    %7 = arith.mulf %5, %5 : vector<8x32xf32>
    %8 = arith.mulf %7, %6 : vector<8x32xf32>
    %9 = math.log %3 : vector<8x32xf32>
    %10 = arith.addf %8, %9 : vector<8x32xf32>
    %cst_4 = arith.constant 5.000000e-01 : f32
    %11 = vector.broadcast %cst_4 : f32 to vector<8x32xf32>
    %12 = arith.mulf %11, %10 : vector<8x32xf32>
    %cst_5 = arith.constant dense<0.000000e+00> : vector<32xf32>
    %13 = vector.multi_reduction <add>, %12, %cst_5 [0] : vector<8x32xf32> to vector<32xf32>
    %14 = vector.shape_cast %13 : vector<32xf32> to vector<1x1x32xf32>
    %c0_6 = arith.constant 0 : index
    %c0_7 = arith.constant 0 : index
    %c0_8 = arith.constant 0 : index
    %15 = vector.load %arg3[%c0_6, %c0_7, %c0_8] : memref<1x1x32xf32, #tpu.memory_space<vmem>>, vector<1x1x32xf32>
    tpu.vector_store %arg3[%c0_6, %c0_7, %c0_8], %14 {strides = array<i32>} : memref<1x1x32xf32, #tpu.memory_space<vmem>>, vector<1x1x32xf32>,
    return
  }
  func.func @transform_0(%arg0: i32) -> (i32, i32) {
    %c0_i32 = arith.constant 0 : i32
    %c0_i32_0 = arith.constant 0 : i32
    return %arg0, %c0_i32 : i32, i32
  }
  func.func @transform_1(%arg0: i32) -> (i32, i32) {
    %c0_i32 = arith.constant 0 : i32
    %c0_i32_0 = arith.constant 0 : i32
    return %arg0, %c0_i32 : i32, i32
  }
  func.func @transform_2(%arg0: i32) -> (i32, i32, i32) {
    %c0_i32 = arith.constant 0 : i32
    %c0_i32_0 = arith.constant 0 : i32
    %c0_i32_1 = arith.constant 0 : i32
    return %arg0, %c0_i32, %c0_i32_0 : i32, i32, i32
  }
}

</mosaic_0001>

<llo_original>
// kernel: tpu_custom_call.1
$region0: #{tpu_custom_call.1}
  #allocation0 [shape = 'u32[]', space=smem, size = 0x4, offset = 0x4, fixed_abs, tag = 'smem constant byte address 0x4 - core index']
  #allocation1 [shape = 'u32[144,128]{1,0:T(1,128)}', space=vmem, size = 0x12000, scoped, tag = 'internal scratch']
  %s0 = inlined_call_operand.hbm [shape: f32[8,64], index: 0, kind: input, shape index: {}]
  %s1 = inlined_call_operand.hbm [shape: f32[8,32], index: 1, kind: input, shape index: {}]
  %s2 = inlined_call_operand.hbm [shape: f32[1,1,32], index: 2, kind: output, shape index: {}]
  %s3 = sld [smem:[#allocation0]]
  $region26: #{tpu_custom_call.1} parent=0
    _
  %s5 = ssub.s32 1, %s3
  %s6 = scalar_select 0, %s5, %s3
  $region1: #{tpu_custom_call.1} parent=0
    #allocation2 [shape = 'u8[4096]{0}', space=vmem, size = 0x1000, scoped, tag = 'input window, operand 0, single buffered']
    #allocation3 [shape = 's32[1]{0}', space=sflag, size = 0x4, scoped, tag = 'scoped memory for tpu_custom_call.1']
    #allocation4 [shape = 's32[1]{0}', space=sflag, size = 0x4, scoped, tag = 'scoped memory for tpu_custom_call.1']
    #allocation5 [shape = 'u8[4096]{0}', space=vmem, size = 0x1000, scoped, tag = 'input window, operand 1, single buffered']
    #allocation6 [shape = 's32[1]{0}', space=sflag, size = 0x4, scoped, tag = 'scoped memory for tpu_custom_call.1']
    #allocation7 [shape = 'u8[512]{0}', space=vmem, size = 0x400, scoped, tag = 'output window, operand 0, single buffered']
    %7 = vsyncpa [#allocation3], 0
    %8 = vsyncpa [#allocation6], 0
    %9 = vsyncpa [#allocation4], 0
    // Predicated region
    $region2: #{tpu_custom_call.1} parent=1 // pred_check
      _
    $region3: #{tpu_custom_call.1} parent=1 // pred_check_branch
      %11 = sbr.rel (0) target = $region5
    $region4: #{tpu_custom_call.1} parent=1 // pred_region
      %s13 = ssub.s32 128, 128
      %14 = vsyncadd [#allocation3], %s13
      %s16 = sshll.u32 [#allocation2], 4
      %s17 = int_to_ptr.vmem [resolvable:$true] %s16
      %19 = dma.hbm_to_vmem [thread:$0]  %s0, 128, %s17, [#allocation3]
    $region5: #{tpu_custom_call.1} parent=1 // pred_fallthru
      _
    // Predicated region
    $region6: #{tpu_custom_call.1} parent=1 // pred_check
      _
    $region7: #{tpu_custom_call.1} parent=1 // pred_check_branch
      %21 = sbr.rel (0) target = $region9
    $region8: #{tpu_custom_call.1} parent=1 // pred_region
      %s23 = ssub.s32 128, 128
      %24 = vsyncadd [#allocation6], %s23
      %s26 = sshll.u32 [#allocation5], 4
      %s27 = int_to_ptr.vmem [resolvable:$true] %s26
      %29 = dma.hbm_to_vmem [thread:$0]  %s1, 128, %s27, [#allocation6]
    $region9: #{tpu_custom_call.1} parent=1 // pred_fallthru
      _
    // Predicated region
    $region10: #{tpu_custom_call.1} parent=1 // pred_check
      _
    $region11: #{tpu_custom_call.1} parent=1 // pred_check_branch
      %31 = sbr.rel (0) target = $region13
    $region12: #{tpu_custom_call.1} parent=1 // pred_region
      %32 = dma.done [#allocation3], 128
    $region13: #{tpu_custom_call.1} parent=1 // pred_fallthru
      _
    // Predicated region
    $region14: #{tpu_custom_call.1} parent=1 // pred_check
      _
    $region15: #{tpu_custom_call.1} parent=1 // pred_check_branch
      %34 = sbr.rel (0) target = $region17
    $region16: #{tpu_custom_call.1} parent=1 // pred_region
      %35 = dma.done [#allocation6], 128
    $region17: #{tpu_custom_call.1} parent=1 // pred_fallthru
      _
    %v36 = vld [vmem:[#allocation2] sm:$0xff]
    %v37 = vmax.f32 %v36, 1e-06
    %v38 = vld [vmem:[#allocation5] sm:$0xff]
    %v39 = vsub.f32 %v38, %v36
    %v40 = vrcp.pop %v37
    %v41 = vmul.f32 %v39, %v39
    %43 = vrot.lane.b32.xlu0 %v40, 96
    %v44 = vpop.permute.xlu0 %43
    %v46 = vmul.f32 %v41, %v44
    %v47 = vlog2.pop %v37
    %v48 = vmul.f32 %v47, 0.6931472
    %50 = vrot.lane.b32.xlu0 %v48, 96
    %v51 = vpop.permute.xlu0 %50
    %v53 = vadd.f32 %v46, %v51
    %v54 = vmul.f32 %v53, 0.5
    %vm55 = vcmask 261120
    %v56 = vsel %vm55, %v54, 0.0
    %v57 = vrot.slane %v56, 4
    %v58 = vadd.f32 %v56, %v57
    %v59 = vrot.slane %v58, 2
    %v60 = vadd.f32 %v58, %v59
    %v61 = vrot.slane %v60, 1
    %v62 = vadd.f32 %v60, %v61
    %vm63 = vcmask 253952
    %64 = vst.msk [vmem:[#allocation7] sm:$0x1] %vm63, %v62
    // Predicated region
    $region18: #{tpu_custom_call.1} parent=1 // pred_check
      _
    $region19: #{tpu_custom_call.1} parent=1 // pred_check_branch
      %66 = sbr.rel (0) target = $region21
    $region20: #{tpu_custom_call.1} parent=1 // pred_region
      %s68 = ssub.s32 16, 16
      %69 = vsyncadd [#allocation4], %s68
      %s71 = sshll.u32 [#allocation7], 4
      %s72 = int_to_ptr.vmem [resolvable:$true] %s71
      %74 = dma.vmem_to_hbm [thread:$0]  %s72, 16, %s2, [#allocation4]
    $region21: #{tpu_custom_call.1} parent=1 // pred_fallthru
      _
    // Predicated region
    $region22: #{tpu_custom_call.1} parent=1 // pred_check
      _
    $region23: #{tpu_custom_call.1} parent=1 // pred_check_branch
      %76 = sbr.rel (0) target = $region25
    $region24: #{tpu_custom_call.1} parent=1 // pred_region
      %77 = dma.done [#allocation4], 16
    $region25: #{tpu_custom_call.1} parent=1 // pred_fallthru
      _
    %78 = vsyncpa [#allocation3], 1
    %79 = vsyncpa [#allocation6], 1
    %80 = vsyncpa [#allocation4], 1

</llo_original>
